<compile_context>
chip_gen: v6e
topology: v6e:2x2x1
jax: 0.10.0
libtpu: 0.0.40
codegen_flags: <defaults>
</compile_context>

<pallas_src>
import jax
import jax.numpy as jnp
from jax.experimental import pallas as pl
from jax.experimental.pallas import tpu as pltpu

_ITEM = 4  # float32 bytes


# ----------------------------------------------------------------------------
# Kernels: pure broadcast stores (write-bound; no ones tensor, no multiply).
# ----------------------------------------------------------------------------
def _fill_block_3d(means_ref, o_ref):
    # means_ref: (ft, 1); o_ref: (bt, ft, st)
    bt, ft, st = o_ref.shape
    o_ref[...] = jnp.broadcast_to(means_ref[...][None, :, :], (bt, ft, st))


def _fill_block_2d(row_ref, o_ref):
    # row_ref: (1, lt) pre-broadcast means row; o_ref: (bt, lt)
    bt, lt = o_ref.shape
    o_ref[...] = jnp.broadcast_to(row_ref[...], (bt, lt))


# ----------------------------------------------------------------------------
# Generation-aware tiling.
# ----------------------------------------------------------------------------
def _tpu_traits():
    """(multi_tensorcore, per-block byte target) for the local TPU generation."""
    try:
        kind = jax.devices()[0].device_kind.lower()
    except Exception:
        kind = ""
    is_v7 = "v7" in kind
    multi_tc = is_v7 or "v5p" in kind or ("v4" in kind and "lite" not in kind)
    # v7x: 64 MiB physical VMEM / 32 MiB scoped default -> keep blocks ~4 MiB
    # (x2 double-buffered).  v5e/v6e: 128 MiB physical -> ~8 MiB blocks shave
    # residual per-step overhead on the single TC.
    target = (4 << 20) if is_v7 else (8 << 20)
    return multi_tc, target


def _choose_tiles_3d(B, F, S, target, multi_tc):
    """Block (bt, ft, st) for output (B, F, S); S is a multiple of 128 here.
    (8,128) rule: ft multiple of 8 or == F; st multiple of 128 or == S."""
    if F * 128 * _ITEM > target:
        # Even a single (F, 128) slab is over budget -> tile F too.
        ft = max(8, (target // (128 * _ITEM)) // 8 * 8)
        st, bt = 128, 1
    else:
        ft = F
        st = min(S, max(128, (target // (F * _ITEM)) // 128 * 128))
        bt = max(1, min(B, target // (F * S * _ITEM))) if st == S else 1
    grid = (pl.cdiv(B, bt), pl.cdiv(F, ft), pl.cdiv(S, st))
    if multi_tc and grid[0] * grid[1] * grid[2] == 1:
        # Ensure >=2 grid steps so the second TensorCore isn't idle.
        if B >= 2:
            bt = pl.cdiv(B, 2)
        elif S // 128 >= 2:
            st = 128 * pl.cdiv(S // 128, 2)
        elif F > 8:
            ft = 8 * pl.cdiv(pl.cdiv(F, 2), 8)
        grid = (pl.cdiv(B, bt), pl.cdiv(F, ft), pl.cdiv(S, st))
    return bt, ft, st, grid


def _choose_tiles_2d(B, L, target, multi_tc):
    """Block (bt, lt) for output (B, L).
    (8,128) rule: bt multiple of 8 or == B; lt multiple of 128 or == L."""
    if L < 128:
        lt = L
    else:
        lt = min((L // 128) * 128, max(128, (target // _ITEM) // 128 * 128))
    row_bytes = lt * _ITEM
    bt = B if B * row_bytes <= target else max(8, (target // row_bytes) // 8 * 8)
    grid = (pl.cdiv(B, bt), pl.cdiv(L, lt))
    if multi_tc and grid[0] * grid[1] == 1:
        if B > 8:
            bt = max(8, 8 * pl.cdiv(pl.cdiv(B, 2), 8))  # multiple of 8, < B
        elif L // 128 >= 2:
            lt = 128 * pl.cdiv(L // 128, 2)
        grid = (pl.cdiv(B, bt), pl.cdiv(L, lt))
    return bt, lt, grid


def _vmem_limit(block_bytes, in_bytes):
    needed = 2 * block_bytes + 2 * in_bytes + (4 << 20)
    return int(min(max(needed, 16 << 20), 48 << 20))


# ----------------------------------------------------------------------------
# Wrapper.
# ----------------------------------------------------------------------------
def mean_deviation_forward(means, x, *, min_pallas_bytes=256 * 1024):
    """means: (F, 1); x: (B, F, S).  Returns float32 (B, F, S) == means * ones.

    Only x's shape/dtype is consumed (matching the PyTorch module)."""
    B, F, S = x.shape
    assert means.shape == (F, 1)
    means = means.astype(jnp.float32)
    out_bytes = B * F * S * _ITEM

    # Tiny outputs: custom-call launch + per-step pipeline overhead dominate;
    # let XLA broadcast (and usually fuse into the consumer) instead.
    if out_bytes < min_pallas_bytes:
        return jnp.broadcast_to(means[None, :, :], (B, F, S))

    multi_tc, target = _tpu_traits()

    if S >= 128 and S % 128 == 0:
        # Lane-dense 3D path: block (bt, ft, st), st a multiple of 128.
        bt, ft, st, grid = _choose_tiles_3d(B, F, S, target, multi_tc)
        block_bytes = bt * ft * st * _ITEM
        return pl.pallas_call(
            _fill_block_3d,
            out_shape=jax.ShapeDtypeStruct((B, F, S), jnp.float32),
            grid=grid,
            in_specs=[pl.BlockSpec((ft, 1), lambda b, f, s: (f, 0))],
            out_specs=pl.BlockSpec((bt, ft, st), lambda b, f, s: (b, f, s)),
            compiler_params=pltpu.CompilerParams(
                dimension_semantics=("parallel",) * len(grid),
                vmem_limit_bytes=_vmem_limit(block_bytes, ft * _ITEM),
            ),
            cost_estimate=pl.CostEstimate(
                flops=0, transcendentals=0, bytes_accessed=out_bytes + F * _ITEM),
        )(means)

    # Lane-density guard: S < 128 / unaligned S would lower to masked partial
    # stores.  Present the output as a 2D (B, F*S) slab with a pre-broadcast
    # means row so the last block dim is lane-dense, then reshape back.
    L = F * S
    row = jnp.broadcast_to(means, (F, S)).reshape(1, L)
    bt, lt, grid = _choose_tiles_2d(B, L, target, multi_tc)
    block_bytes = bt * lt * _ITEM
    out2d = pl.pallas_call(
        _fill_block_2d,
        out_shape=jax.ShapeDtypeStruct((B, L), jnp.float32),
        grid=grid,
        in_specs=[pl.BlockSpec((1, lt), lambda b, l: (0, l))],
        out_specs=pl.BlockSpec((bt, lt), lambda b, l: (b, l)),
        compiler_params=pltpu.CompilerParams(
            dimension_semantics=("parallel",) * len(grid),
            vmem_limit_bytes=_vmem_limit(block_bytes, lt * _ITEM),
        ),
        cost_estimate=pl.CostEstimate(
            flops=0, transcendentals=0, bytes_accessed=out_bytes + L * _ITEM),
    )(row)
    return out2d.reshape(B, F, S)


if __name__ == "__main__":
    key = jax.random.PRNGKey(0)

    # Module-sized demo shapes.
    B, F, S = 2, 8, 128
    means0 = jnp.zeros((F, 1), dtype=jnp.float32)  # __init__ state (zeros)
    x = jax.random.normal(key, (B, F, S), dtype=jnp.float32)

    # 1) Force the Pallas 3D path at demo size (zero means).
    out = mean_deviation_forward(means0, x, min_pallas_bytes=0)
    jax.block_until_ready(out)
    ref = means0 * jnp.ones(x.shape, dtype=jnp.float32)
    assert out.shape == x.shape and out.dtype == jnp.float32
    assert jnp.allclose(out, ref)

    # 2) Non-trivial means, same path.
    means1 = jax.random.normal(jax.random.PRNGKey(1), (F, 1), dtype=jnp.float32)
    out1 = mean_deviation_forward(means1, x, min_pallas_bytes=0)
    jax.block_until_ready(out1)
    assert jnp.allclose(out1, means1 * jnp.ones(x.shape, jnp.float32))

    # 3) S not a multiple of 128 -> lane-dense 2D path.
    x2 = jax.random.normal(jax.random.PRNGKey(2), (4, F, 96), dtype=jnp.float32)
    out2 = mean_deviation_forward(means1, x2, min_pallas_bytes=0)
    jax.block_until_ready(out2)
    assert jnp.allclose(out2, means1 * jnp.ones(x2.shape, jnp.float32))

    # 4) Large-enough output to take the Pallas path at the default threshold.
    F3 = 32
    means3 = jax.random.normal(jax.random.PRNGKey(3), (F3, 1), dtype=jnp.float32)
    x3 = jax.random.normal(jax.random.PRNGKey(4), (8, F3, 512), dtype=jnp.float32)
    out3 = mean_deviation_forward(means3, x3)
    jax.block_until_ready(out3)
    assert jnp.allclose(out3, means3 * jnp.ones(x3.shape, jnp.float32))

    # 5) Tiny-output fallback (pure XLA broadcast) at the default threshold.
    out4 = mean_deviation_forward(means1, x)
    jax.block_until_ready(out4)
    assert jnp.allclose(out4, means1 * jnp.ones(x.shape, jnp.float32))

    print("KERNEL_OK")
</pallas_src>

<mosaic_0001>
module attributes {stable_mosaic.version = 11 : i64} {
  func.func @_fill_block_3d(%arg0: i32, %arg1: i32, %arg2: i32, %arg3: memref<8x1xf32, #tpu.memory_space<vmem>>, %arg4: memref<2x8x128xf32, #tpu.memory_space<vmem>>) attributes {dimension_semantics = [#tpu.dimension_semantics<parallel>, #tpu.dimension_semantics<parallel>, #tpu.dimension_semantics<parallel>], iteration_bounds = array<i64: 1, 1, 1>, scalar_prefetch = 0 : i64, scratch_operands = 0 : i64, tpu.core_type = #tpu.core_type<tc>, window_params = [{transform_indices = @transform_0, window_bounds = array<i64: 8, 1>}, {transform_indices = @transform_1, window_bounds = array<i64: 2, 8, 128>}]} {
    %c0 = arith.constant 0 : index
    %c0_0 = arith.constant 0 : index
    %0 = vector.load %arg3[%c0, %c0_0] : memref<8x1xf32, #tpu.memory_space<vmem>>, vector<8x1xf32>
    %1 = vector.shape_cast %0 : vector<8x1xf32> to vector<1x8x1xf32>
    %2 = vector.shape_cast %1 : vector<1x8x1xf32> to vector<1x8x1xf32>
    %3 = vector.broadcast %2 : vector<1x8x1xf32> to vector<2x8x128xf32>
    %c0_1 = arith.constant 0 : index
    %c0_2 = arith.constant 0 : index
    %c0_3 = arith.constant 0 : index
    %4 = vector.load %arg4[%c0_1, %c0_2, %c0_3] : memref<2x8x128xf32, #tpu.memory_space<vmem>>, vector<2x8x128xf32>
    tpu.vector_store %arg4[%c0_1, %c0_2, %c0_3], %3 {strides = array<i32>} : memref<2x8x128xf32, #tpu.memory_space<vmem>>, vector<2x8x128xf32>,
    return
  }
  func.func @transform_0(%arg0: i32, %arg1: i32, %arg2: i32) -> (i32, i32) {
    %c0_i32 = arith.constant 0 : i32
    %c0_i32_0 = arith.constant 0 : i32
    return %arg1, %c0_i32 : i32, i32
  }
  func.func @transform_1(%arg0: i32, %arg1: i32, %arg2: i32) -> (i32, i32, i32) {
    %c0_i32 = arith.constant 0 : i32
    return %arg0, %arg1, %arg2 : i32, i32, i32
  }
}

</mosaic_0001>

<llo_original>
// kernel: tpu_custom_call.1
$region0: #{tpu_custom_call.1}
  #allocation0 [shape = 'u32[]', space=smem, size = 0x4, offset = 0x4, fixed_abs, tag = 'smem constant byte address 0x4 - core index']
  #allocation1 [shape = 'u32[144,128]{1,0:T(1,128)}', space=vmem, size = 0x12000, scoped, tag = 'internal scratch']
  %s0 = inlined_call_operand.vmem [shape: f32[8,1], index: 0, kind: input, shape index: {}]
  %s1 = inlined_call_operand.hbm [shape: f32[2,8,128], index: 1, kind: output, shape index: {}]
  %s2 = sld [smem:[#allocation0]]
  $region14: #{tpu_custom_call.1} parent=0
    _
  %s4 = ssub.s32 1, %s2
  %s5 = scalar_select 0, %s4, %s2
  $region1: #{tpu_custom_call.1} parent=0
    #allocation2 [shape = 'u8[8192]{0}', space=vmem, size = 0x2000, scoped, tag = 'output window, operand 0, single buffered']
    #allocation3 [shape = 's32[1]{0}', space=sflag, size = 0x4, scoped, tag = 'scoped memory for tpu_custom_call.1']
    %6 = vsyncpa [#allocation3], 0
    // Predicated region
    $region2: #{tpu_custom_call.1} parent=1 // pred_check
      _
    $region3: #{tpu_custom_call.1} parent=1 // pred_check_branch
      %8 = sbr.rel (0) target = $region5
    $region4: #{tpu_custom_call.1} parent=1 // pred_region
      _
    $region5: #{tpu_custom_call.1} parent=1 // pred_fallthru
      _
    %v9 = vld [vmem:[%s0] sm:$0xff]
    %11 = vset.pattern.permute.xlu0 0
    %12 = vperm.xlu0 %11, %v9
    %v13 = vpop.permute.xlu0 %12
    %15 = vst [vmem:[#allocation2] sm:$0xff] %v13
    %16 = vst [vmem:[#allocation2 + $0x8] sm:$0xff] %v13
    // Predicated region
    $region6: #{tpu_custom_call.1} parent=1 // pred_check
      _
    $region7: #{tpu_custom_call.1} parent=1 // pred_check_branch
      %18 = sbr.rel (0) target = $region9
    $region8: #{tpu_custom_call.1} parent=1 // pred_region
      %s20 = ssub.s32 256, 256
      %21 = vsyncadd [#allocation3], %s20
      %s22 = sshll.u32 [#allocation2], 4
      %s23 = int_to_ptr.vmem [resolvable:$true] %s22
      %28 = dma.vmem_to_hbm [thread:$0]  %s23, 256, %s1, [#allocation3], 128, 128, 8
    $region9: #{tpu_custom_call.1} parent=1 // pred_fallthru
      _
    // Predicated region
    $region10: #{tpu_custom_call.1} parent=1 // pred_check
      _
    $region11: #{tpu_custom_call.1} parent=1 // pred_check_branch
      %30 = sbr.rel (0) target = $region13
    $region12: #{tpu_custom_call.1} parent=1 // pred_region
      %31 = dma.done [#allocation3], 256
    $region13: #{tpu_custom_call.1} parent=1 // pred_fallthru
      _
    %32 = vsyncpa [#allocation3], 1

</llo_original>
